<compile_context>
chip_gen: v6e
topology: v6e:2x2x1
jax: 0.10.0
libtpu: 0.0.40
codegen_flags: <defaults>
</compile_context>

<pallas_src>
import functools

import jax
import jax.numpy as jnp
from jax.experimental import pallas as pl
from jax.experimental.pallas import tpu as pltpu


BMA_final_classes = [
    "myelocytes",                     # 0
    "metamyelocytes",                 # 1
    "neutrophils/bands",              # 2
    "monocytes",                      # 3
    "eosinophils",                    # 4
    "erythroid precursors",           # 5
    "lymphocytes",                    # 6
    "plasma cells",                   # 7
    "blasts and blast-equivalents",   # 8
]
_CLASS_INDEX = {name: i for i, name in enumerate(BMA_final_classes)}

_LANE = 128            # TPU lane width
_MAX_TB = 4096         # batch tile (rows); 16 MiB double-buffered f32 footprint
_SEG_BYTES = 512       # minimum contiguous per-row HBM segment we want to DMA


def _r_acc_kernel(g_ref, l_ref, out_ref, acc_ref, *, lane_idx, d, batch, rem):
    """One grid step over a (tb, cb) tile of the selected column block.

    acc_ref: (1, cb) f32 per-lane partial count, resident across the grid.
    rem:     B % tb (static); nonzero iff the last tile has padded rows.
    """
    pid = pl.program_id(0)
    nsteps = pl.num_programs(0)

    @pl.when(pid == 0)
    def _init():
        acc_ref[...] = jnp.zeros_like(acc_ref)

    # Full lane-wide tile compute; upcast to f32 on the VPU (free vs. DMA).
    g = g_ref[...].astype(jnp.float32)
    l = l_ref[...].astype(jnp.float32)
    err_min = jnp.abs(g - l) - jnp.float32(d) * jnp.abs(g)
    ok = (err_min < 0.0).astype(jnp.float32)

    if rem:
        # Only the final tile carries padded rows; mask it there and nowhere
        # else (static Python branch -> full tiles get the mask-free path).
        @pl.when(pid == nsteps - 1)
        def _acc_last():
            rows = jax.lax.broadcasted_iota(jnp.int32, ok.shape, 0)
            masked = jnp.where(rows < rem, ok, 0.0)
            acc_ref[...] += jnp.sum(masked, axis=0, keepdims=True)

        @pl.when(pid != nsteps - 1)
        def _acc_full():
            acc_ref[...] += jnp.sum(ok, axis=0, keepdims=True)
    else:
        acc_ref[...] += jnp.sum(ok, axis=0, keepdims=True)

    @pl.when(pid == nsteps - 1)
    def _finalize():
        # One-time lane selection + normalization (cross-lane reduce happens
        # exactly once, not per step).
        lanes = jax.lax.broadcasted_iota(jnp.int32, acc_ref.shape, 1)
        sel = jnp.where(lanes == lane_idx, acc_ref[...], jnp.float32(0.0))
        out_ref[...] = jnp.sum(sel, keepdims=True) * jnp.float32(1.0 / batch)


class ClassRAcc:
    """JAX/Pallas equivalent of the PyTorch Class_R_acc module."""

    def __init__(self, class_name):
        assert class_name in BMA_final_classes, (
            f"Invalid class name: {class_name}. Supported: {BMA_final_classes}"
        )
        self.class_name = class_name
        self.class_idx = _CLASS_INDEX[class_name]

    def __call__(self, g, logits, d=0.2, *, max_tb=_MAX_TB):
        # NOTE: the original PyTorch forward ignores the `d` it receives (the
        # per-class helpers always call custom_r_acc with the default 0.2).
        # We honor the passed value; results are identical for d=0.2.
        assert 0.0 < d < 1.0, (
            "Relative allowable error proportion must be between 0 and 1")
        g = jnp.asarray(g)          # keep incoming dtype (bf16 stays bf16)
        logits = jnp.asarray(logits)
        assert g.ndim == 2 and logits.shape == g.shape
        B, C = g.shape
        assert self.class_idx < C

        itemsize = jnp.dtype(g.dtype).itemsize

        # Only DMA the column block containing the class column.  For
        # sub-4-byte dtypes widen the block so the contiguous per-row HBM
        # segment stays >= 512 B (full bursts).
        if C <= _LANE:
            cb = C                  # full-row load is already the minimum
            col_block = 0
            lane_idx = self.class_idx
        else:
            cb = max(_LANE, _SEG_BYTES // itemsize)
            cb = (cb // _LANE) * _LANE
            cb = min(cb, pl.cdiv(C, _LANE) * _LANE)   # never wider than padded C
            col_block = self.class_idx // cb
            lane_idx = self.class_idx % cb

        # Batch tiling: large tiles amortize the ~0.35 us per-step overhead.
        # tb must be a multiple of 8 unless it equals the full batch.
        tb = B if B <= max_tb else (max_tb // 8) * 8
        grid_b = pl.cdiv(B, tb)
        rem = B % tb if tb < B else 0

        kernel = functools.partial(
            _r_acc_kernel,
            lane_idx=int(lane_idx),
            d=float(d),
            batch=int(B),
            rem=int(rem),
        )

        bytes_accessed = 2 * B * cb * itemsize + 4
        flops = 6 * B * cb

        out = pl.pallas_call(
            kernel,
            out_shape=jax.ShapeDtypeStruct((1, 1), jnp.float32),
            grid_spec=pltpu.PrefetchScalarGridSpec(
                num_scalar_prefetch=0,
                grid=(grid_b,),
                in_specs=[
                    pl.BlockSpec((tb, cb), lambda i: (i, col_block)),
                    pl.BlockSpec((tb, cb), lambda i: (i, col_block)),
                ],
                # Constant block index -> output stays resident; written once
                # at the last grid step.
                out_specs=pl.BlockSpec((1, 1), lambda i: (0, 0)),
                scratch_shapes=[pltpu.VMEM((1, cb), jnp.float32)],
            ),
            # The grid axis carries the accumulator -> must be "arbitrary".
            compiler_params=pltpu.CompilerParams(
                dimension_semantics=("arbitrary",),
                vmem_limit_bytes=32 * 1024 * 1024,
            ),
            cost_estimate=pl.CostEstimate(
                flops=flops, transcendentals=0, bytes_accessed=bytes_accessed),
        )(g, logits)
        return out[0, 0]


def _reference(g, logits, class_idx, d=0.2):
    gc = g[:, class_idx].astype(jnp.float32)
    lc = logits[:, class_idx].astype(jnp.float32)
    err = jnp.abs(gc - lc)
    indicator = jnp.where(err - d * jnp.abs(gc) < 0, 1.0, 0.0)
    return jnp.mean(indicator)


if __name__ == "__main__":
    key = jax.random.PRNGKey(0)
    k1, k2, k3, k4, k5, k6 = jax.random.split(key, 6)

    # Test 1: small shape matching the module (batch=8, 16 class columns),
    # single tile, no masking.
    B1, C1 = 8, 16
    g1 = jax.nn.softmax(jax.random.normal(k1, (B1, C1), jnp.float32), axis=-1)
    l1 = jax.nn.softmax(jax.random.normal(k2, (B1, C1), jnp.float32), axis=-1)
    mod1 = ClassRAcc("eosinophils")
    out1 = jax.block_until_ready(mod1(g1, l1))
    ref1 = _reference(g1, l1, _CLASS_INDEX["eosinophils"])
    assert jnp.allclose(out1, ref1, atol=1e-6), (out1, ref1)

    # Test 2: exercises the batch grid + padded-last-tile row masking at small
    # scale (B=20 with an 8-row tile -> 3 grid steps, last tile 4 valid rows).
    B2, C2 = 20, 16
    g2 = jax.nn.softmax(jax.random.normal(k3, (B2, C2), jnp.float32), axis=-1)
    l2 = jax.nn.softmax(jax.random.normal(k4, (B2, C2), jnp.float32), axis=-1)
    mod2 = ClassRAcc("myelocytes")
    out2 = jax.block_until_ready(mod2(g2, l2, max_tb=8))
    ref2 = _reference(g2, l2, _CLASS_INDEX["myelocytes"])
    assert jnp.allclose(out2, ref2, atol=1e-6), (out2, ref2)

    # Test 3: C > 128 exercises the column-block selection path.
    B3, C3 = 16, 200
    g3 = jax.nn.softmax(jax.random.normal(k5, (B3, C3), jnp.float32), axis=-1)
    l3 = jax.nn.softmax(jax.random.normal(k6, (B3, C3), jnp.float32), axis=-1)
    mod3 = ClassRAcc("blasts and blast-equivalents")
    out3 = jax.block_until_ready(mod3(g3, l3))
    ref3 = _reference(g3, l3, _CLASS_INDEX["blasts and blast-equivalents"])
    assert jnp.allclose(out3, ref3, atol=1e-6), (out3, ref3)

    print("KERNEL_OK")
</pallas_src>

<mosaic_0001>
module attributes {stable_mosaic.version = 11 : i64} {
  func.func @_r_acc_kernel(%arg0: i32, %arg1: memref<8x16xf32, #tpu.memory_space<vmem>>, %arg2: memref<8x16xf32, #tpu.memory_space<vmem>>, %arg3: memref<1x1xf32, #tpu.memory_space<vmem>>, %arg4: memref<1x16xf32, #tpu.memory_space<vmem>>) attributes {dimension_semantics = [#tpu.dimension_semantics<arbitrary>], iteration_bounds = array<i64: 1>, scalar_prefetch = 0 : i64, scratch_operands = 1 : i64, tpu.core_type = #tpu.core_type<tc>, window_params = [{transform_indices = @transform_0, window_bounds = array<i64: 8, 16>}, {transform_indices = @transform_1, window_bounds = array<i64: 8, 16>}, {pipeline_mode = #tpu.pipeline_mode<synchronous>, transform_indices = @transform_2, window_bounds = array<i64: 1, 1>}]} {
    %c0_i32 = arith.constant 0 : i32
    %0 = arith.cmpi eq, %arg0, %c0_i32 : i32
    %1 = arith.extui %0 : i1 to i32
    %c0_i32_0 = arith.constant 0 : i32
    %2 = arith.cmpi ne, %1, %c0_i32_0 : i32
    scf.if %2 {
      %cst_12 = arith.constant 0.000000e+00 : f32
      %23 = vector.broadcast %cst_12 : f32 to vector<1x16xf32>
      %c0_13 = arith.constant 0 : index
      %c0_14 = arith.constant 0 : index
      %24 = vector.load %arg4[%c0_13, %c0_14] : memref<1x16xf32, #tpu.memory_space<vmem>>, vector<1x16xf32>
      tpu.vector_store %arg4[%c0_13, %c0_14], %23 {strides = array<i32>} : memref<1x16xf32, #tpu.memory_space<vmem>>, vector<1x16xf32>,
    } else {
    }
    %c0 = arith.constant 0 : index
    %c0_1 = arith.constant 0 : index
    %3 = vector.load %arg1[%c0, %c0_1] : memref<8x16xf32, #tpu.memory_space<vmem>>, vector<8x16xf32>
    %c0_2 = arith.constant 0 : index
    %c0_3 = arith.constant 0 : index
    %4 = vector.load %arg2[%c0_2, %c0_3] : memref<8x16xf32, #tpu.memory_space<vmem>>, vector<8x16xf32>
    %5 = arith.subf %3, %4 : vector<8x16xf32>
    %6 = math.absf %5 : vector<8x16xf32>
    %7 = math.absf %3 : vector<8x16xf32>
    %cst = arith.constant 2.000000e-01 : f32
    %8 = vector.broadcast %cst : f32 to vector<8x16xf32>
    %9 = arith.mulf %8, %7 : vector<8x16xf32>
    %10 = arith.subf %6, %9 : vector<8x16xf32>
    %cst_4 = arith.constant 0.000000e+00 : f32
    %11 = vector.broadcast %cst_4 : f32 to vector<8x16xf32>
    %12 = arith.cmpf olt, %10, %11 : vector<8x16xf32>
    %13 = arith.extui %12 : vector<8x16xi1> to vector<8x16xi32>
    %14 = arith.sitofp %13 : vector<8x16xi32> to vector<8x16xf32>
    %c0_5 = arith.constant 0 : index
    %c0_6 = arith.constant 0 : index
    %15 = vector.load %arg4[%c0_5, %c0_6] : memref<1x16xf32, #tpu.memory_space<vmem>>, vector<1x16xf32>
    %cst_7 = arith.constant dense<0.000000e+00> : vector<16xf32>
    %16 = vector.multi_reduction <add>, %14, %cst_7 [0] : vector<8x16xf32> to vector<16xf32>
    %17 = vector.shape_cast %16 : vector<16xf32> to vector<1x16xf32>
    %18 = arith.addf %15, %17 : vector<1x16xf32>
    %c0_8 = arith.constant 0 : index
    %c0_9 = arith.constant 0 : index
    %19 = vector.load %arg4[%c0_8, %c0_9] : memref<1x16xf32, #tpu.memory_space<vmem>>, vector<1x16xf32>
    tpu.vector_store %arg4[%c0_8, %c0_9], %18 {strides = array<i32>} : memref<1x16xf32, #tpu.memory_space<vmem>>, vector<1x16xf32>,
    %c0_i32_10 = arith.constant 0 : i32
    %20 = arith.cmpi eq, %arg0, %c0_i32_10 : i32
    %21 = arith.extui %20 : i1 to i32
    %c0_i32_11 = arith.constant 0 : i32
    %22 = arith.cmpi ne, %21, %c0_i32_11 : i32
    scf.if %22 {
      %23 = tpu.iota {dimensions = array<i32: 1>} : vector<1x16xi32>
      %c4_i32 = arith.constant 4 : i32
      %24 = vector.broadcast %c4_i32 : i32 to vector<1x16xi32>
      %25 = arith.cmpi eq, %23, %24 : vector<1x16xi32>
      %c0_12 = arith.constant 0 : index
      %c0_13 = arith.constant 0 : index
      %26 = vector.load %arg4[%c0_12, %c0_13] : memref<1x16xf32, #tpu.memory_space<vmem>>, vector<1x16xf32>
      %cst_14 = arith.constant 0.000000e+00 : f32
      %27 = vector.broadcast %cst_14 : f32 to vector<1x16xf32>
      %28 = arith.select %25, %26, %27 : vector<1x16xi1>, vector<1x16xf32>
      %29 = vector.shape_cast %28 : vector<1x16xf32> to vector<1x1x16xf32>
      %cst_15 = arith.constant dense<0.000000e+00> : vector<1xf32>
      %30 = vector.multi_reduction <add>, %29, %cst_15 [1, 2] : vector<1x1x16xf32> to vector<1xf32>
      %31 = vector.shape_cast %30 : vector<1xf32> to vector<1x1x1xf32>
      %32 = vector.extract %31[0, 0, 0] : f32 from vector<1x1x1xf32>
      %33 = vector.broadcast %32 : f32 to vector<1x1xf32>
      %cst_16 = arith.constant 1.250000e-01 : f32
      %34 = vector.broadcast %cst_16 : f32 to vector<1x1xf32>
      %35 = arith.mulf %33, %34 : vector<1x1xf32>
      %c0_17 = arith.constant 0 : index
      %c0_18 = arith.constant 0 : index
      %36 = vector.load %arg3[%c0_17, %c0_18] : memref<1x1xf32, #tpu.memory_space<vmem>>, vector<1x1xf32>
      tpu.vector_store %arg3[%c0_17, %c0_18], %35 {strides = array<i32>} : memref<1x1xf32, #tpu.memory_space<vmem>>, vector<1x1xf32>,
    } else {
    }
    return
  }
  func.func @transform_0(%arg0: i32) -> (i32, i32) {
    %c0_i32 = arith.constant 0 : i32
    %c0_i32_0 = arith.constant 0 : i32
    return %arg0, %c0_i32 : i32, i32
  }
  func.func @transform_1(%arg0: i32) -> (i32, i32) {
    %c0_i32 = arith.constant 0 : i32
    %c0_i32_0 = arith.constant 0 : i32
    return %arg0, %c0_i32 : i32, i32
  }
  func.func @transform_2(%arg0: i32) -> (i32, i32) {
    %c0_i32 = arith.constant 0 : i32
    %c0_i32_0 = arith.constant 0 : i32
    %c0_i32_1 = arith.constant 0 : i32
    return %c0_i32, %c0_i32_0 : i32, i32
  }
}

</mosaic_0001>

<llo_original>
// kernel: tpu_custom_call.1
$region0: #{tpu_custom_call.1}
  #allocation0 [shape = 'u32[]', space=smem, size = 0x4, offset = 0x4, fixed_abs, tag = 'smem constant byte address 0x4 - core index']
  #allocation1 [shape = 'u32[144,128]{1,0:T(1,128)}', space=vmem, size = 0x12000, scoped, tag = 'internal scratch']
  #allocation2 [shape = 'f32[1,16]{1,0:T(1,128)}', space=vmem, size = 0x200, scoped, tag = 'scratch operand']
  %s0 = inlined_call_operand.hbm [shape: f32[8,16], index: 0, kind: input, shape index: {}]
  %s1 = inlined_call_operand.hbm [shape: f32[8,16], index: 1, kind: input, shape index: {}]
  %s2 = inlined_call_operand.hbm [shape: f32[1,1], index: 2, kind: output, shape index: {}]
  %s3 = sld [smem:[#allocation0]]
  $region34: #{tpu_custom_call.1} parent=0
    _
  %s5 = ssub.s32 1, %s3
  %s6 = scalar_select 0, %s5, %s3
  $region1: #{tpu_custom_call.1} parent=0
    #allocation3 [shape = 'u8[4096]{0}', space=vmem, size = 0x1000, scoped, tag = 'input window, operand 0, single buffered']
    #allocation4 [shape = 's32[1]{0}', space=sflag, size = 0x4, scoped, tag = 'scoped memory for tpu_custom_call.1']
    #allocation5 [shape = 's32[1]{0}', space=sflag, size = 0x4, scoped, tag = 'scoped memory for tpu_custom_call.1']
    #allocation6 [shape = 'u8[4096]{0}', space=vmem, size = 0x1000, scoped, tag = 'input window, operand 1, single buffered']
    #allocation7 [shape = 's32[1]{0}', space=sflag, size = 0x4, scoped, tag = 'scoped memory for tpu_custom_call.1']
    #allocation8 [shape = 'u8[512]{0}', space=vmem, size = 0x400, scoped, tag = 'output window, operand 0, single buffered']
    %7 = vsyncpa [#allocation4], 0
    %8 = vsyncpa [#allocation7], 0
    %9 = vsyncpa [#allocation5], 0
    // Predicated region
    $region2: #{tpu_custom_call.1} parent=1 // pred_check
      _
    $region3: #{tpu_custom_call.1} parent=1 // pred_check_branch
      %11 = sbr.rel (0) target = $region5
    $region4: #{tpu_custom_call.1} parent=1 // pred_region
      %s13 = ssub.s32 128, 128
      %14 = vsyncadd [#allocation4], %s13
      %s16 = sshll.u32 [#allocation3], 4
      %s17 = int_to_ptr.vmem [resolvable:$true] %s16
      %19 = dma.hbm_to_vmem [thread:$0]  %s0, 128, %s17, [#allocation4]
    $region5: #{tpu_custom_call.1} parent=1 // pred_fallthru
      _
    // Predicated region
    $region6: #{tpu_custom_call.1} parent=1 // pred_check
      _
    $region7: #{tpu_custom_call.1} parent=1 // pred_check_branch
      %21 = sbr.rel (0) target = $region9
    $region8: #{tpu_custom_call.1} parent=1 // pred_region
      %s23 = ssub.s32 128, 128
      %24 = vsyncadd [#allocation7], %s23
      %s26 = sshll.u32 [#allocation6], 4
      %s27 = int_to_ptr.vmem [resolvable:$true] %s26
      %29 = dma.hbm_to_vmem [thread:$0]  %s1, 128, %s27, [#allocation7]
    $region9: #{tpu_custom_call.1} parent=1 // pred_fallthru
      _
    // Predicated region
    $region10: #{tpu_custom_call.1} parent=1 // pred_check
      _
    $region11: #{tpu_custom_call.1} parent=1 // pred_check_branch
      %31 = sbr.rel (0) target = $region13
    $region12: #{tpu_custom_call.1} parent=1 // pred_region
      %32 = dma.done [#allocation4], 128
    $region13: #{tpu_custom_call.1} parent=1 // pred_fallthru
      _
    // Predicated region
    $region14: #{tpu_custom_call.1} parent=1 // pred_check
      _
    $region15: #{tpu_custom_call.1} parent=1 // pred_check_branch
      %34 = sbr.rel (0) target = $region17
    $region16: #{tpu_custom_call.1} parent=1 // pred_region
      %35 = dma.done [#allocation7], 128
    $region17: #{tpu_custom_call.1} parent=1 // pred_fallthru
      _
    %p36 = scmp.eq.s32.totalorder 0, 0
    // Predicated region
    $region18: #{tpu_custom_call.1} parent=1 // pred_check
      %p37 = pneg %p36
    $region19: #{tpu_custom_call.1} parent=1 // pred_check_branch
      %39 = sbr.rel (%p37) target = $region21
    $region20: #{tpu_custom_call.1} parent=1 // pred_region
      %vm40 = vcmask 122880
      %41 = vst.msk [vmem:[#allocation2] sm:$0x1] %vm40, 0.0
    $region21: #{tpu_custom_call.1} parent=1 // pred_fallthru
      _
    %v42 = vld [vmem:[#allocation3] sm:$0xff]
    %v43 = vld [vmem:[#allocation6] sm:$0xff]
    %v44 = vsub.f32 %v42, %v43
    %v45 = vand.u32 2147483647, %v44
    %v46 = vand.u32 2147483647, %v42
    %v47 = vmul.f32 %v46, 0.2
    %v48 = vsub.f32 %v45, %v47
    %vm49 = vcmp.lt.f32.partialorder %v48, 0.0
    %v50 = vsel %vm49, 1, 0
    %v51 = vcvt.s32.f32 %v50
    %v52 = vld [vmem:[#allocation2] sm:$0x1]
    %vm53 = vcmask 130048
    %v54 = vsel %vm53, %v51, 0.0
    %v55 = vrot.slane %v54, 4
    %v56 = vadd.f32 %v54, %v55
    %v57 = vrot.slane %v56, 2
    %v58 = vadd.f32 %v56, %v57
    %v59 = vrot.slane %v58, 1
    %v60 = vadd.f32 %v58, %v59
    %v61 = vadd.f32 %v52, %v60
    %vm62 = vcmask 122880
    %63 = vst.msk [vmem:[#allocation2] sm:$0x1] %vm62, %v61
    // Predicated region
    $region22: #{tpu_custom_call.1} parent=1 // pred_check
      %p64 = pneg %p36
    $region23: #{tpu_custom_call.1} parent=1 // pred_check_branch
      %66 = sbr.rel (%p64) target = $region25
    $region24: #{tpu_custom_call.1} parent=1 // pred_region
      %v67 = vlaneseq
      %v68 = vand.u32 %v67, 127
      %vm69 = vcmp.eq.s32.totalorder %v68, 4
      %v70 = vld [vmem:[#allocation2] sm:$0x1]
      %v71 = vsel %vm69, %v70, 0.0
      %v72 = vsel %vm62, %v71, 0.0
      %73 = vadd.xlane.f32.xlu0 %v72
      %v74 = vpop.xlane.xlu0 %73
      %v75 = vrot.slane %v74, 4
      %v76 = vadd.f32 %v74, %v75
      %v77 = vrot.slane %v76, 2
      %v78 = vadd.f32 %v76, %v77
      %v79 = vrot.slane %v78, 1
      %v80 = vadd.f32 %v78, %v79
      %s81 = vtos %v80
      %v82 = vstv %s81
      %v83 = vmul.f32 %v82, 0.125
      %vm84 = vcmask 0
      %85 = vst.msk [vmem:[#allocation8] sm:$0x1] %vm84, %v83
    $region25: #{tpu_custom_call.1} parent=1 // pred_fallthru
      _
    // Predicated region
    $region26: #{tpu_custom_call.1} parent=1 // pred_check
      _
    $region27: #{tpu_custom_call.1} parent=1 // pred_check_branch
      %87 = sbr.rel (0) target = $region29
    $region28: #{tpu_custom_call.1} parent=1 // pred_region
      %s89 = ssub.s32 16, 16
      %90 = vsyncadd [#allocation5], %s89
      %s92 = sshll.u32 [#allocation8], 4
      %s93 = int_to_ptr.vmem [resolvable:$true] %s92
      %95 = dma.vmem_to_hbm [thread:$0]  %s93, 16, %s2, [#allocation5]
    $region29: #{tpu_custom_call.1} parent=1 // pred_fallthru
      _
    // Predicated region
    $region30: #{tpu_custom_call.1} parent=1 // pred_check
      _
    $region31: #{tpu_custom_call.1} parent=1 // pred_check_branch
      %97 = sbr.rel (0) target = $region33
    $region32: #{tpu_custom_call.1} parent=1 // pred_region
      %98 = dma.done [#allocation5], 16
    $region33: #{tpu_custom_call.1} parent=1 // pred_fallthru
      _
    %99 = vsyncpa [#allocation4], 1
    %100 = vsyncpa [#allocation7], 1
    %101 = vsyncpa [#allocation5], 1

</llo_original>
